<compile_context>
chip_gen: v7x
topology: tpu7x:2x2x1
jax: 0.10.0
libtpu: 0.0.40
codegen_flags: <defaults>
</compile_context>

<pallas_src>
import functools

import numpy as np
import jax
import jax.numpy as jnp
from jax.experimental import pallas as pl
from jax.experimental.pallas import tpu as pltpu


def _roundup(v, m):
    return int(m * pl.cdiv(v, m))


def gcn_net_kernel(idx_ref, ax_ref, w_ref, bias_ref, out_ref, h1_s, pool_s, *,
                   n_nodes, in_dim, n_graphs, l1, l2, hsize, out_width,
                   r_asel, r_w2, r_wl1, r_wl2):
    # ---- unpack the lane-dense operand slabs (static slices = views) -------
    a = ax_ref[0:n_nodes, 0:n_nodes]                        # (N, N)   bf16
    x = ax_ref[0:n_nodes, n_nodes:n_nodes + in_dim]         # (N, F)   bf16
    a_sel = ax_ref[r_asel:r_asel + n_graphs, 0:n_nodes]     # (G, N)   bf16

    w1 = w_ref[0:in_dim, 0:l1]                              # (F, l1)
    w2 = w_ref[r_w2:r_w2 + l1, 0:l2]                        # (l1, l2)
    wl1 = w_ref[r_wl1:r_wl1 + l1 + l2, 0:hsize]             # (l1+l2, H)
    wl2 = w_ref[r_wl2:r_wl2 + hsize, 0:2]                   # (H, 2)

    b1 = bias_ref[0:1, 0:l1]
    b2 = bias_ref[1:2, 0:l2]
    bl1 = bias_ref[2:3, 0:hsize]
    bl2 = bias_ref[3:4, 0:2]

    # ---- GCNConv 1: tanh(A @ X @ W1 + b1), reassociated (A@X)@W1 (F << l1) --
    ax = jnp.dot(a, x, preferred_element_type=jnp.float32)          # (N, F)
    h1 = jnp.tanh(jnp.dot(ax.astype(jnp.bfloat16), w1,
                          preferred_element_type=jnp.float32) + b1)  # (N,l1) f32
    h1_s[...] = h1

    # ---- GCNConv 2 aggregated only for the G readout rows:
    #      h2[idx] = tanh(A[idx] @ (h1 @ W2) + b2)  (tanh commutes with gather)
    hw2 = jnp.dot(h1.astype(jnp.bfloat16), w2,
                  preferred_element_type=jnp.float32).astype(jnp.bfloat16)
    h2_sel = jnp.tanh(jnp.dot(a_sel, hw2,
                              preferred_element_type=jnp.float32) + b2)  # (G,l2)

    # ---- first-node-per-graph readout into one lane-dense (G,128) row buffer
    for g in range(n_graphs):
        pool_s[g:g + 1, 0:l1] = h1_s[pl.ds(idx_ref[g], 1), :]
    pool_s[:, l1:l1 + l2] = h2_sel

    # ---- MLP head: single 64-wide linear1, relu, linear2, log_softmax ------
    pooled = pool_s[:, 0:l1 + l2].astype(jnp.bfloat16)               # (G, 64)
    hidden_pre = jnp.dot(pooled, wl1,
                         preferred_element_type=jnp.float32) + bl1   # self.feature
    h = jnp.maximum(hidden_pre, 0.0)
    logits = jnp.dot(h.astype(jnp.bfloat16), wl2,
                     preferred_element_type=jnp.float32) + bl2       # (G, 2)
    m = jnp.max(logits, axis=1, keepdims=True)
    lse = jnp.log(jnp.sum(jnp.exp(logits - m), axis=1, keepdims=True)) + m
    logp = logits - lse

    # ---- single lane-dense (G, out_width) slab: [feature | logp | pad] -----
    parts = [hidden_pre, logp]
    if out_width > hsize + 2:
        parts.append(jnp.zeros((n_graphs, out_width - hsize - 2), jnp.float32))
    out_ref[...] = jnp.concatenate(parts, axis=1)


def net_forward(x, a_norm, first_idx, params):
    """Fused GCN forward. Returns (log_probs (G,2), feature (G,hidden))."""
    G = int(first_idx.shape[0])
    N, F = int(x.shape[0]), int(x.shape[1])
    l1 = int(params["w1"].shape[1])
    l2 = int(params["w2"].shape[1])
    hsize = int(params["wl1"].shape[1])
    assert max(N + F, l1, l2, l1 + l2, hsize) <= 128, "packing assumes <=128 lanes"
    out_width = _roundup(hsize + 2, 128)

    # -- operand slab 1: [A | X] in rows 0:N, pre-gathered A[first_idx] below --
    r_asel = _roundup(N, 16)                     # bf16 sublane-tile aligned start
    ax_slab = jnp.zeros((r_asel + G, 128), jnp.bfloat16)
    ax_slab = ax_slab.at[0:N, 0:N].set(a_norm.astype(jnp.bfloat16))
    ax_slab = ax_slab.at[0:N, N:N + F].set(x.astype(jnp.bfloat16))
    ax_slab = ax_slab.at[r_asel:r_asel + G, 0:N].set(
        a_norm[first_idx].astype(jnp.bfloat16))

    # -- operand slab 2: the four weight matrices, bf16, at 16-row offsets ----
    r_w2 = _roundup(F, 16)
    r_wl1 = r_w2 + _roundup(l1, 16)
    r_wl2 = r_wl1 + _roundup(l1 + l2, 16)
    w_rows = r_wl2 + _roundup(hsize, 16)
    w_slab = jnp.zeros((w_rows, 128), jnp.bfloat16)
    w_slab = w_slab.at[0:F, 0:l1].set(params["w1"].astype(jnp.bfloat16))
    w_slab = w_slab.at[r_w2:r_w2 + l1, 0:l2].set(params["w2"].astype(jnp.bfloat16))
    w_slab = w_slab.at[r_wl1:r_wl1 + l1 + l2, 0:hsize].set(
        params["wl1"].astype(jnp.bfloat16))
    w_slab = w_slab.at[r_wl2:r_wl2 + hsize, 0:2].set(
        params["wl2"].astype(jnp.bfloat16))

    # -- operand slab 3: the four f32 biases, one lane-dense row each ---------
    def pad_row(b):
        b = b.reshape(1, -1).astype(jnp.float32)
        return jnp.pad(b, ((0, 0), (0, 128 - b.shape[1])))
    bias_slab = jnp.concatenate(
        [pad_row(params["b1"]), pad_row(params["b2"]),
         pad_row(params["bl1"]), pad_row(params["bl2"])], axis=0)

    vmem = pl.BlockSpec(memory_space=pltpu.MemorySpace.VMEM)
    smem = pl.BlockSpec(memory_space=pltpu.MemorySpace.SMEM)

    kernel = functools.partial(
        gcn_net_kernel, n_nodes=N, in_dim=F, n_graphs=G, l1=l1, l2=l2,
        hsize=hsize, out_width=out_width, r_asel=r_asel,
        r_w2=r_w2, r_wl1=r_wl1, r_wl2=r_wl2)

    flops = 2 * (N * N * F + N * F * l1 + N * l1 * l2 + G * N * l2
                 + G * (l1 + l2) * hsize + G * hsize * 2)
    transcendentals = N * l1 + G * l2 + G * 2
    bytes_accessed = (ax_slab.size * 2 + w_slab.size * 2 + bias_slab.size * 4
                      + G * 4 + G * out_width * 4)

    slab = pl.pallas_call(
        kernel,
        out_shape=jax.ShapeDtypeStruct((G, out_width), jnp.float32),
        in_specs=[smem, vmem, vmem, vmem],
        out_specs=vmem,
        scratch_shapes=[pltpu.VMEM((N, l1), jnp.float32),    # h1 (for readout)
                        pltpu.VMEM((G, 128), jnp.float32)],  # pooled row buffer
        cost_estimate=pl.CostEstimate(flops=flops,
                                      transcendentals=transcendentals,
                                      bytes_accessed=bytes_accessed),
    )(first_idx.astype(jnp.int32), ax_slab, w_slab, bias_slab)

    feature = slab[:, :hsize]
    logprobs = slab[:, hsize:hsize + 2]
    return logprobs, feature


# ----------------------------- glue (plain JAX / numpy) -----------------------------

def build_norm_adj(edge_index, num_nodes):
    """Dense GCN normalization: D^-1/2 (A + I) D^-1/2."""
    src, dst = edge_index
    A = jnp.zeros((num_nodes, num_nodes), jnp.float32).at[dst, src].set(1.0)
    A = A + jnp.eye(num_nodes, dtype=jnp.float32)                 # self loops
    deg = jnp.sum(A, axis=1)
    dinv = jnp.where(deg > 0, 1.0 / jnp.sqrt(deg), 0.0)
    return dinv[:, None] * A * dinv[None, :]


def first_node_indices(batch, num_graphs):
    """Index of the first node of every graph (torch.unique is sorted)."""
    batch_np = np.asarray(batch)
    idx = [int(np.nonzero(batch_np == g)[0][0]) for g in range(num_graphs)]
    return jnp.asarray(idx, jnp.int32)


def nll_loss_and_acc(logprobs, y):
    loss = -jnp.mean(jnp.take_along_axis(logprobs, y[:, None], axis=1))
    pred = jnp.argmax(logprobs, axis=1)
    acc = jnp.mean((pred == y).astype(jnp.float32))
    return loss, acc


def reference_forward(x, a_norm, first_idx, params):
    """Pure-JAX f32 reference matching the torch forward."""
    h1 = jnp.tanh(a_norm @ (x @ params["w1"]) + params["b1"])
    h2 = jnp.tanh(a_norm @ (h1 @ params["w2"]) + params["b2"])
    pooled = jnp.concatenate([h1[first_idx], h2[first_idx]], axis=1)
    feat = pooled @ params["wl1"] + params["bl1"]
    logits = jnp.maximum(feat, 0.0) @ params["wl2"] + params["bl2"]
    return jax.nn.log_softmax(logits, axis=1), feat


def init_params(key, input_dim, latent_dim, hidden_size):
    ks = jax.random.split(key, 6)

    def lin(k, fan_in, fan_out):
        bound = 1.0 / np.sqrt(fan_in)
        return jax.random.uniform(k, (fan_in, fan_out), jnp.float32, -bound, bound)

    return {
        # GCNConv weights (in, out); biases (1, out)
        "w1": lin(ks[0], input_dim, latent_dim[0]),
        "b1": jnp.zeros((1, latent_dim[0]), jnp.float32),
        "w2": lin(ks[1], latent_dim[0], latent_dim[1]),
        "b2": jnp.zeros((1, latent_dim[1]), jnp.float32),
        # Linear layers (in, out)
        "wl1": lin(ks[2], sum(latent_dim), hidden_size),
        "bl1": jax.random.uniform(ks[3], (1, hidden_size), jnp.float32,
                                  -1.0 / np.sqrt(sum(latent_dim)),
                                  1.0 / np.sqrt(sum(latent_dim))),
        "wl2": lin(ks[4], hidden_size, 2),
        "bl2": jax.random.uniform(ks[5], (1, 2), jnp.float32,
                                  -1.0 / np.sqrt(hidden_size),
                                  1.0 / np.sqrt(hidden_size)),
    }
    # TODO(synk): F.dropout branch (with_dropout=True) not implemented; this is
    # the default with_dropout=False forward path.


if __name__ == "__main__":
    # Small synthetic batched graph: 2 ring graphs of 8 nodes each (N = 16).
    input_dim = 4
    latent_dim = [32, 32]
    hidden_size = 32
    nodes_per_graph = 8
    num_graphs = 2
    N = nodes_per_graph * num_graphs

    key = jax.random.PRNGKey(0)
    k_x, k_p = jax.random.split(key)

    x = jax.random.normal(k_x, (N, input_dim), jnp.float32)

    # undirected ring edges (both directions), per graph
    src_list, dst_list = [], []
    for g in range(num_graphs):
        base = g * nodes_per_graph
        for i in range(nodes_per_graph):
            a = base + i
            b = base + (i + 1) % nodes_per_graph
            src_list += [a, b]
            dst_list += [b, a]
    edge_index = (jnp.asarray(src_list, jnp.int32), jnp.asarray(dst_list, jnp.int32))

    batch = np.repeat(np.arange(num_graphs), nodes_per_graph)
    y = jnp.asarray([0, 1], jnp.int32)

    a_norm = build_norm_adj(edge_index, N)
    first_idx = first_node_indices(batch, num_graphs)
    params = init_params(k_p, input_dim, latent_dim, hidden_size)

    logits, feature = net_forward(x, a_norm, first_idx, params)
    loss, acc = nll_loss_and_acc(logits, y)
    jax.block_until_ready((logits, feature, loss, acc))

    assert logits.shape == (num_graphs, 2)
    assert feature.shape == (num_graphs, hidden_size)
    # log_softmax rows should exponentiate-sum to 1
    assert np.allclose(np.exp(np.asarray(logits)).sum(axis=1), 1.0, atol=1e-5)
    # loose comparison vs f32 reference (kernel runs the GCN/head in bf16)
    ref_logp, ref_feat = reference_forward(x, a_norm, first_idx, params)
    assert np.allclose(np.asarray(feature), np.asarray(ref_feat), atol=0.3)
    assert np.allclose(np.exp(np.asarray(logits)), np.exp(np.asarray(ref_logp)),
                       atol=0.1)
    print("KERNEL_OK")
</pallas_src>

<mosaic_0001>
module attributes {stable_mosaic.version = 11 : i64} {
  func.func @gcn_net_kernel(%arg0: memref<2xi32, #tpu.memory_space<smem>>, %arg1: memref<18x128xbf16, #tpu.memory_space<vmem>>, %arg2: memref<144x128xbf16, #tpu.memory_space<vmem>>, %arg3: memref<4x128xf32, #tpu.memory_space<vmem>>, %arg4: memref<2x128xf32, #tpu.memory_space<vmem>>, %arg5: memref<16x32xf32, #tpu.memory_space<vmem>>, %arg6: memref<2x128xf32, #tpu.memory_space<vmem>>) attributes {dimension_semantics = [], scalar_prefetch = 0 : i64, scratch_operands = 2 : i64, tpu.core_type = #tpu.core_type<tc>} {
    %c0 = arith.constant 0 : index
    %c0_0 = arith.constant 0 : index
    %0 = vector.load %arg1[%c0, %c0_0] : memref<18x128xbf16, #tpu.memory_space<vmem>>, vector<16x16xbf16>
    %c0_1 = arith.constant 0 : index
    %c16 = arith.constant 16 : index
    %1 = vector.load %arg1[%c0_1, %c16] : memref<18x128xbf16, #tpu.memory_space<vmem>>, vector<16x4xbf16>
    %c16_2 = arith.constant 16 : index
    %c0_3 = arith.constant 0 : index
    %2 = vector.load %arg1[%c16_2, %c0_3] : memref<18x128xbf16, #tpu.memory_space<vmem>>, vector<2x16xbf16>
    %c0_4 = arith.constant 0 : index
    %c0_5 = arith.constant 0 : index
    %3 = vector.load %arg2[%c0_4, %c0_5] : memref<144x128xbf16, #tpu.memory_space<vmem>>, vector<4x32xbf16>
    %c16_6 = arith.constant 16 : index
    %c0_7 = arith.constant 0 : index
    %4 = vector.load %arg2[%c16_6, %c0_7] : memref<144x128xbf16, #tpu.memory_space<vmem>>, vector<32x32xbf16>
    %c48 = arith.constant 48 : index
    %c0_8 = arith.constant 0 : index
    %5 = vector.load %arg2[%c48, %c0_8] : memref<144x128xbf16, #tpu.memory_space<vmem>>, vector<64x32xbf16>
    %c112 = arith.constant 112 : index
    %c0_9 = arith.constant 0 : index
    %6 = vector.load %arg2[%c112, %c0_9] : memref<144x128xbf16, #tpu.memory_space<vmem>>, vector<32x2xbf16>
    %c0_10 = arith.constant 0 : index
    %c0_11 = arith.constant 0 : index
    %7 = vector.load %arg3[%c0_10, %c0_11] : memref<4x128xf32, #tpu.memory_space<vmem>>, vector<1x32xf32>
    %c1 = arith.constant 1 : index
    %c0_12 = arith.constant 0 : index
    %8 = vector.load %arg3[%c1, %c0_12] : memref<4x128xf32, #tpu.memory_space<vmem>>, vector<1x32xf32>
    %c2 = arith.constant 2 : index
    %c0_13 = arith.constant 0 : index
    %9 = vector.load %arg3[%c2, %c0_13] : memref<4x128xf32, #tpu.memory_space<vmem>>, vector<1x32xf32>
    %c3 = arith.constant 3 : index
    %c0_14 = arith.constant 0 : index
    %10 = vector.load %arg3[%c3, %c0_14] : memref<4x128xf32, #tpu.memory_space<vmem>>, vector<1x2xf32>
    %cst = arith.constant dense<0.000000e+00> : vector<16x4xf32>
    %11 = tpu.matmul %0, %1, %cst {dimension_numbers = #tpu.dot_dimension_numbers<[1], [0], [0], [1], [0, 0, 1, 1], [], []>} : vector<16x16xbf16>, vector<16x4xbf16>, vector<16x4xf32> -> vector<16x4xf32>
    %12 = arith.truncf %11 : vector<16x4xf32> to vector<16x4xbf16>
    %cst_15 = arith.constant dense<0.000000e+00> : vector<16x32xf32>
    %13 = tpu.matmul %12, %3, %cst_15 {dimension_numbers = #tpu.dot_dimension_numbers<[1], [0], [0], [1], [0, 0, 1, 1], [], []>} : vector<16x4xbf16>, vector<4x32xbf16>, vector<16x32xf32> -> vector<16x32xf32>
    %14 = vector.broadcast %7 : vector<1x32xf32> to vector<16x32xf32>
    %15 = arith.addf %13, %14 : vector<16x32xf32>
    %16 = math.tanh %15 : vector<16x32xf32>
    %c0_16 = arith.constant 0 : index
    %c0_17 = arith.constant 0 : index
    %17 = vector.load %arg5[%c0_16, %c0_17] : memref<16x32xf32, #tpu.memory_space<vmem>>, vector<16x32xf32>
    tpu.vector_store %arg5[%c0_16, %c0_17], %16 {strides = array<i32>} : memref<16x32xf32, #tpu.memory_space<vmem>>, vector<16x32xf32>,
    %18 = arith.truncf %16 : vector<16x32xf32> to vector<16x32xbf16>
    %cst_18 = arith.constant dense<0.000000e+00> : vector<16x32xf32>
    %19 = tpu.matmul %18, %4, %cst_18 {dimension_numbers = #tpu.dot_dimension_numbers<[1], [0], [0], [1], [0, 0, 1, 1], [], []>} : vector<16x32xbf16>, vector<32x32xbf16>, vector<16x32xf32> -> vector<16x32xf32>
    %20 = arith.truncf %19 : vector<16x32xf32> to vector<16x32xbf16>
    %cst_19 = arith.constant dense<0.000000e+00> : vector<2x32xf32>
    %21 = tpu.matmul %2, %20, %cst_19 {dimension_numbers = #tpu.dot_dimension_numbers<[1], [0], [0], [1], [0, 0, 1, 1], [], []>} : vector<2x16xbf16>, vector<16x32xbf16>, vector<2x32xf32> -> vector<2x32xf32>
    %22 = vector.broadcast %8 : vector<1x32xf32> to vector<2x32xf32>
    %23 = arith.addf %21, %22 : vector<2x32xf32>
    %24 = math.tanh %23 : vector<2x32xf32>
    %c0_20 = arith.constant 0 : index
    %25 = memref.load %arg0[%c0_20] : memref<2xi32, #tpu.memory_space<smem>>
    %26 = arith.index_cast %25 : i32 to index
    %c0_21 = arith.constant 0 : index
    %27 = vector.load %arg5[%26, %c0_21] : memref<16x32xf32, #tpu.memory_space<vmem>>, vector<1x32xf32>
    %c0_22 = arith.constant 0 : index
    %c0_23 = arith.constant 0 : index
    %28 = vector.load %arg6[%c0_22, %c0_23] : memref<2x128xf32, #tpu.memory_space<vmem>>, vector<1x32xf32>
    tpu.vector_store %arg6[%c0_22, %c0_23], %27 {strides = array<i32>} : memref<2x128xf32, #tpu.memory_space<vmem>>, vector<1x32xf32>,
    %c1_24 = arith.constant 1 : index
    %29 = memref.load %arg0[%c1_24] : memref<2xi32, #tpu.memory_space<smem>>
    %30 = arith.index_cast %29 : i32 to index
    %c0_25 = arith.constant 0 : index
    %31 = vector.load %arg5[%30, %c0_25] : memref<16x32xf32, #tpu.memory_space<vmem>>, vector<1x32xf32>
    %c1_26 = arith.constant 1 : index
    %c0_27 = arith.constant 0 : index
    %32 = vector.load %arg6[%c1_26, %c0_27] : memref<2x128xf32, #tpu.memory_space<vmem>>, vector<1x32xf32>
    tpu.vector_store %arg6[%c1_26, %c0_27], %31 {strides = array<i32>} : memref<2x128xf32, #tpu.memory_space<vmem>>, vector<1x32xf32>,
    %c0_28 = arith.constant 0 : index
    %c32 = arith.constant 32 : index
    %33 = vector.load %arg6[%c0_28, %c32] : memref<2x128xf32, #tpu.memory_space<vmem>>, vector<2x32xf32>
    tpu.vector_store %arg6[%c0_28, %c32], %24 {strides = array<i32>} : memref<2x128xf32, #tpu.memory_space<vmem>>, vector<2x32xf32>,
    %c0_29 = arith.constant 0 : index
    %c0_30 = arith.constant 0 : index
    %34 = vector.load %arg6[%c0_29, %c0_30] : memref<2x128xf32, #tpu.memory_space<vmem>>, vector<2x64xf32>
    %35 = arith.truncf %34 : vector<2x64xf32> to vector<2x64xbf16>
    %cst_31 = arith.constant dense<0.000000e+00> : vector<2x32xf32>
    %36 = tpu.matmul %35, %5, %cst_31 {dimension_numbers = #tpu.dot_dimension_numbers<[1], [0], [0], [1], [0, 0, 1, 1], [], []>} : vector<2x64xbf16>, vector<64x32xbf16>, vector<2x32xf32> -> vector<2x32xf32>
    %37 = vector.broadcast %9 : vector<1x32xf32> to vector<2x32xf32>
    %38 = arith.addf %36, %37 : vector<2x32xf32>
    %cst_32 = arith.constant 0.000000e+00 : f32
    %39 = vector.broadcast %cst_32 : f32 to vector<2x32xf32>
    %40 = arith.maximumf %38, %39 : vector<2x32xf32>
    %41 = arith.truncf %40 : vector<2x32xf32> to vector<2x32xbf16>
    %cst_33 = arith.constant dense<0.000000e+00> : vector<2x2xf32>
    %42 = tpu.matmul %41, %6, %cst_33 {dimension_numbers = #tpu.dot_dimension_numbers<[1], [0], [0], [1], [0, 0, 1, 1], [], []>} : vector<2x32xbf16>, vector<32x2xbf16>, vector<2x2xf32> -> vector<2x2xf32>
    %43 = vector.broadcast %10 : vector<1x2xf32> to vector<2x2xf32>
    %44 = arith.addf %42, %43 : vector<2x2xf32>
    %cst_34 = arith.constant dense<0xFF800000> : vector<2xf32>
    %45 = vector.multi_reduction <maximumf>, %44, %cst_34 [1] : vector<2x2xf32> to vector<2xf32>
    %46 = vector.shape_cast %45 : vector<2xf32> to vector<2x1xf32>
    %47 = vector.broadcast %46 : vector<2x1xf32> to vector<2x2xf32>
    %48 = arith.subf %44, %47 : vector<2x2xf32>
    %49 = math.exp %48 : vector<2x2xf32>
    %cst_35 = arith.constant dense<0.000000e+00> : vector<2xf32>
    %50 = vector.multi_reduction <add>, %49, %cst_35 [1] : vector<2x2xf32> to vector<2xf32>
    %51 = vector.shape_cast %50 : vector<2xf32> to vector<2x1xf32>
    %52 = math.log %51 : vector<2x1xf32>
    %53 = arith.addf %52, %46 : vector<2x1xf32>
    %54 = vector.broadcast %53 : vector<2x1xf32> to vector<2x2xf32>
    %55 = arith.subf %44, %54 : vector<2x2xf32>
    %cst_36 = arith.constant 0.000000e+00 : f32
    %56 = vector.broadcast %cst_36 : f32 to vector<2x94xf32>
    %57 = tpu.concatenate %38, %55, %56 in 1 : vector<2x32xf32>, vector<2x2xf32>, vector<2x94xf32> -> vector<2x128xf32>
    %c0_37 = arith.constant 0 : index
    %c0_38 = arith.constant 0 : index
    %58 = vector.load %arg4[%c0_37, %c0_38] : memref<2x128xf32, #tpu.memory_space<vmem>>, vector<2x128xf32>
    tpu.vector_store %arg4[%c0_37, %c0_38], %57 {strides = array<i32>} : memref<2x128xf32, #tpu.memory_space<vmem>>, vector<2x128xf32>,
    return
  }
}

</mosaic_0001>

<llo_original>
// kernel: tpu_custom_call.1
$region0: #{tpu_custom_call.1}
  #allocation0 [shape = 'u32[]', space=smem, size = 0x4, offset = 0x4, fixed_abs, tag = 'smem constant byte address 0x4 - core index']
  #allocation1 [shape = 'u32[144,128]{1,0:T(1,128)}', space=vmem, size = 0x12000, scoped, tag = 'internal scratch']
  #allocation2 [shape = 'f32[16,32]{1,0:T(8,128)}', space=vmem, size = 0x2000, scoped, tag = 'scratch operand']
  #allocation3 [shape = 'f32[2,128]{1,0:T(2,128)}', space=vmem, size = 0x400, scoped, tag = 'scratch operand']
  %s0 = inlined_call_operand.hbm [shape: s32[2], index: 0, kind: input, shape index: {}]
  %s1 = inlined_call_operand.hbm [shape: bf16[18,128], index: 1, kind: input, shape index: {}]
  %s2 = inlined_call_operand.hbm [shape: bf16[144,128], index: 2, kind: input, shape index: {}]
  %s3 = inlined_call_operand.vmem [shape: f32[4,128], index: 3, kind: input, shape index: {}]
  %s4 = inlined_call_operand.hbm [shape: f32[2,128], index: 4, kind: output, shape index: {}]
  %s5 = sld [smem:[#allocation0]]
  $region38: #{tpu_custom_call.1} parent=0
    _
  %s7 = ssub.s32 1, %s5
  %s8 = scalar_select 0, %s7, %s5
  $region1: #{tpu_custom_call.1} parent=0
    #allocation4 [shape = 'u8[512]{0}', space=smem, size = 0x200, scoped, tag = 'input window, operand 0, single buffered']
    #allocation5 [shape = 's32[1]{0}', space=sflag, size = 0x4, scoped, tag = 'scoped memory for tpu_custom_call.1']
    #allocation6 [shape = 's32[1]{0}', space=sflag, size = 0x4, scoped, tag = 'scoped memory for tpu_custom_call.1']
    #allocation7 [shape = 's32[1]{0}', space=sflag, size = 0x4, scoped, tag = 'scoped memory for tpu_custom_call.1']
    #allocation8 [shape = 'u8[6144]{0}', space=vmem, size = 0x1800, scoped, tag = 'input window, operand 1, single buffered']
    #allocation9 [shape = 'u8[36864]{0}', space=vmem, size = 0x9000, scoped, tag = 'input window, operand 2, single buffered']
    #allocation10 [shape = 's32[1]{0}', space=sflag, size = 0x4, scoped, tag = 'scoped memory for tpu_custom_call.1']
    #allocation11 [shape = 'u8[1024]{0}', space=vmem, size = 0x400, scoped, tag = 'output window, operand 0, single buffered']
    %9 = vsyncpa [#allocation7], 0
    %10 = vsyncpa [#allocation5], 0
    %11 = vsyncpa [#allocation10], 0
    %12 = vsyncpa [#allocation6], 0
    // Predicated region
    $region2: #{tpu_custom_call.1} parent=1 // pred_check
      _
    $region3: #{tpu_custom_call.1} parent=1 // pred_check_branch
      %14 = sbr.rel (0) target = $region5
    $region4: #{tpu_custom_call.1} parent=1 // pred_region
      %s16 = ssub.s32 16, 16
      %17 = vsyncadd [#allocation7], %s16
      %20 = dma.hbm_to_smem %s0, 16, [#allocation4], [#allocation7]
    $region5: #{tpu_custom_call.1} parent=1 // pred_fallthru
      _
    // Predicated region
    $region6: #{tpu_custom_call.1} parent=1 // pred_check
      _
    $region7: #{tpu_custom_call.1} parent=1 // pred_check_branch
      %22 = sbr.rel (0) target = $region9
    $region8: #{tpu_custom_call.1} parent=1 // pred_region
      %s24 = ssub.s32 192, 192
      %25 = vsyncadd [#allocation5], %s24
      %s26 = sshll.u32 [#allocation8], 4
      %s27 = int_to_ptr.vmem [resolvable:$true] %s26
      %32 = dma.hbm_to_vmem [thread:$0]  %s1, 192, %s27, [#allocation5], 64, 64, 4
    $region9: #{tpu_custom_call.1} parent=1 // pred_fallthru
      _
    // Predicated region
    $region10: #{tpu_custom_call.1} parent=1 // pred_check
      _
    $region11: #{tpu_custom_call.1} parent=1 // pred_check_branch
      %34 = sbr.rel (0) target = $region13
    $region12: #{tpu_custom_call.1} parent=1 // pred_region
      %s36 = ssub.s32 1152, 1152
      %37 = vsyncadd [#allocation10], %s36
      %s38 = sshll.u32 [#allocation9], 4
      %s39 = int_to_ptr.vmem [resolvable:$true] %s38
      %44 = dma.hbm_to_vmem [thread:$0]  %s2, 1152, %s39, [#allocation10], 64, 64, 4
    $region13: #{tpu_custom_call.1} parent=1 // pred_fallthru
      _
    // Predicated region
    $region14: #{tpu_custom_call.1} parent=1 // pred_check
      _
    $region15: #{tpu_custom_call.1} parent=1 // pred_check_branch
      %46 = sbr.rel (0) target = $region17
    $region16: #{tpu_custom_call.1} parent=1 // pred_region
      _
    $region17: #{tpu_custom_call.1} parent=1 // pred_fallthru
      _
    // Predicated region
    $region18: #{tpu_custom_call.1} parent=1 // pred_check
      _
    $region19: #{tpu_custom_call.1} parent=1 // pred_check_branch
      %48 = sbr.rel (0) target = $region21
    $region20: #{tpu_custom_call.1} parent=1 // pred_region
      %49 = dma.done [#allocation7], 16
    $region21: #{tpu_custom_call.1} parent=1 // pred_fallthru
      _
    // Predicated region
    $region22: #{tpu_custom_call.1} parent=1 // pred_check
      _
    $region23: #{tpu_custom_call.1} parent=1 // pred_check_branch
      %51 = sbr.rel (0) target = $region25
    $region24: #{tpu_custom_call.1} parent=1 // pred_region
      %52 = dma.done [#allocation5], 192
    $region25: #{tpu_custom_call.1} parent=1 // pred_fallthru
      _
    // Predicated region
    $region26: #{tpu_custom_call.1} parent=1 // pred_check
      _
    $region27: #{tpu_custom_call.1} parent=1 // pred_check_branch
      %54 = sbr.rel (0) target = $region29
    $region28: #{tpu_custom_call.1} parent=1 // pred_region
      %55 = dma.done [#allocation10], 1152
    $region29: #{tpu_custom_call.1} parent=1 // pred_fallthru
      _
    %56 = sfence
    %v58 = vld [vmem:[#allocation8] sm:$0xf]
    %v59 = vld [vmem:[#allocation8 + $0x4] sm:$0xf]
    %v60 = vld [vmem:[#allocation8 + $0x8] sm:$0x1]
    %v61 = vld [vmem:[#allocation9] sm:$0x3]
    %v62 = vld [vmem:[#allocation9 + $0x8] sm:$0xf]
    %v63 = vld [vmem:[#allocation9 + $0xc] sm:$0xf]
    %v64 = vld [vmem:[#allocation9 + $0x10] sm:$0xf]
    %v65 = vld [vmem:[#allocation9 + $0x14] sm:$0xf]
    %v66 = vld [vmem:[#allocation9 + $0x18] sm:$0xf]
    %v67 = vld [vmem:[#allocation9 + $0x1c] sm:$0xf]
    %v68 = vld [vmem:[#allocation9 + $0x20] sm:$0xf]
    %v69 = vld [vmem:[#allocation9 + $0x24] sm:$0xf]
    %v70 = vld [vmem:[#allocation9 + $0x28] sm:$0xf]
    %v71 = vld [vmem:[#allocation9 + $0x2c] sm:$0xf]
    %v72 = vld [vmem:[#allocation9 + $0x30] sm:$0xf]
    %v73 = vld [vmem:[#allocation9 + $0x34] sm:$0xf]
    %v74 = vld [vmem:[#allocation9 + $0x38] sm:$0xf]
    %v75 = vld [vmem:[#allocation9 + $0x3c] sm:$0xf]
    %v76 = vld [vmem:[#allocation9 + $0x40] sm:$0xf]
    %v77 = vld [vmem:[#allocation9 + $0x44] sm:$0xf]
    %v78 = vld [vmem:[%s3] sm:$0x1]
    %v79 = vld [vmem:[%s3 + $0x1] sm:$0x1]
    %v80 = vld [vmem:[%s3 + $0x2] sm:$0x1]
    %v81 = vld [vmem:[%s3 + $0x3] sm:$0x1]
    %v84 = vunpack.c.l.b16 %v58
    %v85 = vunpack.c.l.b16 %v59
    %v86 = vpack.c.b16 %v85, %v84
    %87 = vrot.lane.b32.xlu0 %v86, 112
    %v88 = vpop.permute.xlu0 %87
    %vm90 = vcmask 130048
    %v92 = vsel %vm90, %v86, 0
    %94 = vmatprep.subr.bf16.mxu0 0
    %95 = vmatpush1.bf16.msra.mxu0 %v88
    %96 = vmatprep.subr.bf16.mxu0 0
    %97 = vmatpush1.bf16.msra.mxu0 0
    %98 = vmatprep.subr.bf16.mxu0 0
    %99 = vmatpush1.bf16.msra.mxu0 0
    %100 = vmatprep.subr.bf16.mxu0 0
    %101 = vmatpush1.bf16.msra.mxu0 0
    %102 = vmatprep.subr.bf16.mxu0 0
    %103 = vmatpush1.bf16.msra.mxu0 0
    %104 = vmatprep.subr.bf16.mxu0 0
    %105 = vmatpush1.bf16.msra.mxu0 0
    %106 = vmatprep.subr.bf16.mxu0 0
    %107 = vmatpush1.bf16.msra.mxu0 0
    %108 = vmatprep.subr.bf16.mxu0 0
    %109 = vmatpush1.bf16.msra.mxu0 0
    %110 = vmatprep.subr.bf16.mxu0 0
    %111 = vmatpush1.bf16.msra.mxu0 0
    %112 = vmatprep.subr.bf16.mxu0 0
    %113 = vmatpush1.bf16.msra.mxu0 0
    %114 = vmatprep.subr.bf16.mxu0 0
    %115 = vmatpush1.bf16.msra.mxu0 0
    %116 = vmatprep.subr.bf16.mxu0 0
    %117 = vmatpush1.bf16.msra.mxu0 0
    %118 = vmatprep.subr.bf16.mxu0 0
    %119 = vmatpush1.bf16.msra.mxu0 0
    %120 = vmatprep.subr.bf16.mxu0 0
    %121 = vmatpush1.bf16.msra.mxu0 0
    %122 = vmatprep.subr.bf16.mxu0 0
    %123 = vmatpush1.bf16.msra.mxu0 0
    %124 = vmatprep.subr.bf16.mxu0 0
    %125 = vmatpush1.bf16.msra.mxu0 0
    %126 = vmatprep.mubr.bf16.mxu0 0
    %127 = vmatmul.mubr.bf16.gmra.mrb[0].mxu0 %v92
    %v128 = vpop.f32.mrb[0].mxu0
    %v129 = vadd.f32 0.0, %v128
    %v130 = vpop.f32.mrb[0].mxu0
    %v131 = vpop.f32.mrb[0].mxu0
    %v132 = vadd.f32 0.0, %v131
    %v133 = vpop.f32.mrb[0].mxu0
    %134 = vdwg.mxu0
    %v135 = vpack.c.bf16 %v132, %v129
    %v136 = vlaneseq
    %v137 = vshrl.u32 %v136, 7
    %v138 = vsub.s32 0, %v137
    %v139 = vrot.slane %v78, %v138
    %vm140 = vcmask 31744
    %v142 = vsel %vm140, %v135, 0
    %vm144 = vcmask 1041408
    %v146 = vsel %vm144, %v61, 0
    %148 = vmatprep.subr.bf16.mxu0 0
    %149 = vmatpush1.bf16.msra.mxu0 %v146
    %150 = vmatprep.subr.bf16.mxu0 0
    %151 = vmatpush1.bf16.msra.mxu0 0
    %152 = vmatprep.subr.bf16.mxu0 0
    %153 = vmatpush1.bf16.msra.mxu0 0
    %154 = vmatprep.subr.bf16.mxu0 0
    %155 = vmatpush1.bf16.msra.mxu0 0
    %156 = vmatprep.subr.bf16.mxu0 0
    %157 = vmatpush1.bf16.msra.mxu0 0
    %158 = vmatprep.subr.bf16.mxu0 0
    %159 = vmatpush1.bf16.msra.mxu0 0
    %160 = vmatprep.subr.bf16.mxu0 0
    %161 = vmatpush1.bf16.msra.mxu0 0
    %162 = vmatprep.subr.bf16.mxu0 0
    %163 = vmatpush1.bf16.msra.mxu0 0
    %164 = vmatprep.subr.bf16.mxu0 0
    %165 = vmatpush1.bf16.msra.mxu0 0
    %166 = vmatprep.subr.bf16.mxu0 0
    %167 = vmatpush1.bf16.msra.mxu0 0
    %168 = vmatprep.subr.bf16.mxu0 0
    %169 = vmatpush1.bf16.msra.mxu0 0
    %170 = vmatprep.subr.bf16.mxu0 0
    %171 = vmatpush1.bf16.msra.mxu0 0
    %172 = vmatprep.subr.bf16.mxu0 0
    %173 = vmatpush1.bf16.msra.mxu0 0
    %174 = vmatprep.subr.bf16.mxu0 0
    %175 = vmatpush1.bf16.msra.mxu0 0
    %176 = vmatprep.subr.bf16.mxu0 0
    %177 = vmatpush1.bf16.msra.mxu0 0
    %178 = vmatprep.subr.bf16.mxu0 0
    %179 = vmatpush1.bf16.msra.mxu0 0
    %180 = vmatprep.mubr.bf16.mxu0 0
    %181 = vmatmul.mubr.bf16.gmra.mrb[0].mxu0 %v142
    %v182 = vpop.f32.mrb[0].mxu0
    %v183 = vadd.f32 %v139, %v182
    %v184 = vpop.f32.mrb[0].mxu0
    %v185 = vpop.f32.mrb[0].mxu0
    %v186 = vadd.f32 %v139, %v185
    %v187 = vpop.f32.mrb[0].mxu0
    %188 = vdwg.mxu0
    %v189 = vtanh.pop %v183
    %v190 = vtanh.pop %v186
    %vm191 = vcmask 261120
    %192 = vst.msk [vmem:[#allocation2] sm:$0xff] %vm191, %v189
    %193 = vst.msk [vmem:[#allocation2 + $0x8] sm:$0xff] %vm191, %v190
    %v194 = vpack.c.bf16 %v190, %v189
    %v199 = vunpack.c.l.b16 %v62
    %v200 = vunpack.c.l.b16 %v63
    %v201 = vunpack.c.l.b16 %v64
    %v202 = vunpack.c.l.b16 %v65
    %v203 = vpack.c.b16 %v200, %v199
    %v204 = vpack.c.b16 %v202, %v201
    %v208 = vsel %vm191, %v194, 0
    %210 = vmatprep.subr.bf16.mxu0 0
    %211 = vmatpush1.bf16.msra.mxu0 %v203
    %212 = vmatprep.subr.bf16.mxu0 0
    %213 = vmatpush1.bf16.msra.mxu0 %v204
    %214 = vmatprep.subr.bf16.mxu0 0
    %215 = vmatpush1.bf16.msra.mxu0 0
    %216 = vmatprep.subr.bf16.mxu0 0
    %217 = vmatpush1.bf16.msra.mxu0 0
    %218 = vmatprep.subr.bf16.mxu0 0
    %219 = vmatpush1.bf16.msra.mxu0 0
    %220 = vmatprep.subr.bf16.mxu0 0
    %221 = vmatpush1.bf16.msra.mxu0 0
    %222 = vmatprep.subr.bf16.mxu0 0
    %223 = vmatpush1.bf16.msra.mxu0 0
    %224 = vmatprep.subr.bf16.mxu0 0
    %225 = vmatpush1.bf16.msra.mxu0 0
    %226 = vmatprep.subr.bf16.mxu0 0
    %227 = vmatpush1.bf16.msra.mxu0 0
    %228 = vmatprep.subr.bf16.mxu0 0
    %229 = vmatpush1.bf16.msra.mxu0 0
    %230 = vmatprep.subr.bf16.mxu0 0
    %231 = vmatpush1.bf16.msra.mxu0 0
    %232 = vmatprep.subr.bf16.mxu0 0
    %233 = vmatpush1.bf16.msra.mxu0 0
    %234 = vmatprep.subr.bf16.mxu0 0
    %235 = vmatpush1.bf16.msra.mxu0 0
    %236 = vmatprep.subr.bf16.mxu0 0
    %237 = vmatpush1.bf16.msra.mxu0 0
    %238 = vmatprep.subr.bf16.mxu0 0
    %239 = vmatpush1.bf16.msra.mxu0 0
    %240 = vmatprep.subr.bf16.mxu0 0
    %241 = vmatpush1.bf16.msra.mxu0 0
    %242 = vmatprep.mubr.bf16.mxu0 0
    %243 = vmatmul.mubr.bf16.gmra.mrb[0].mxu0 %v208
    %v244 = vpop.f32.mrb[0].mxu0
    %v245 = vadd.f32 0.0, %v244
    %v246 = vpop.f32.mrb[0].mxu0
    %v247 = vpop.f32.mrb[0].mxu0
    %v248 = vadd.f32 0.0, %v247
    %v249 = vpop.f32.mrb[0].mxu0
    %250 = vdwg.mxu0
    %v251 = vpack.c.bf16 %v248, %v245
    %v252 = vlaneseq
    %v253 = vshrl.u32 %v252, 7
    %v254 = vsub.s32 0, %v253
    %v255 = vrot.slane %v79, %v254
    %v257 = vsel %vm90, %v60, 0
    %259 = vmatprep.subr.bf16.mxu0 0
    %260 = vmatpush1.bf16.msra.mxu0 %v251
    %261 = vmatprep.subr.bf16.mxu0 0
    %262 = vmatpush1.bf16.msra.mxu0 0
    %263 = vmatprep.subr.bf16.mxu0 0
    %264 = vmatpush1.bf16.msra.mxu0 0
    %265 = vmatprep.subr.bf16.mxu0 0
    %266 = vmatpush1.bf16.msra.mxu0 0
    %267 = vmatprep.subr.bf16.mxu0 0
    %268 = vmatpush1.bf16.msra.mxu0 0
    %269 = vmatprep.subr.bf16.mxu0 0
    %270 = vmatpush1.bf16.msra.mxu0 0
    %271 = vmatprep.subr.bf16.mxu0 0
    %272 = vmatpush1.bf16.msra.mxu0 0
    %273 = vmatprep.subr.bf16.mxu0 0
    %274 = vmatpush1.bf16.msra.mxu0 0
    %275 = vmatprep.subr.bf16.mxu0 0
    %276 = vmatpush1.bf16.msra.mxu0 0
    %277 = vmatprep.subr.bf16.mxu0 0
    %278 = vmatpush1.bf16.msra.mxu0 0
    %279 = vmatprep.subr.bf16.mxu0 0
    %280 = vmatpush1.bf16.msra.mxu0 0
    %281 = vmatprep.subr.bf16.mxu0 0
    %282 = vmatpush1.bf16.msra.mxu0 0
    %283 = vmatprep.subr.bf16.mxu0 0
    %284 = vmatpush1.bf16.msra.mxu0 0
    %285 = vmatprep.subr.bf16.mxu0 0
    %286 = vmatpush1.bf16.msra.mxu0 0
    %287 = vmatprep.subr.bf16.mxu0 0
    %288 = vmatpush1.bf16.msra.mxu0 0
    %289 = vmatprep.subr.bf16.mxu0 0
    %290 = vmatpush1.bf16.msra.mxu0 0
    %291 = vmatprep.mubr.bf16.mxu0 0
    %292 = vmatmul.mubr.bf16.gmra.mrb[0].mxu0 %v257
    %v293 = vpop.f32.mrb[0].mxu0
    %v294 = vadd.f32 %v255, %v293
    %v295 = vpop.f32.mrb[0].mxu0
    %v296 = vpop.f32.mrb[0].mxu0
    %v297 = vpop.f32.mrb[0].mxu0
    %298 = vdwg.mxu0
    %v299 = vtanh.pop %v294
    %s300 = sld [smem:[#allocation4]]
    %s301 = scalar_lea.vmem [#allocation2], %s300
    %v302 = vld [vmem:[%s301] sm:$0x1]
    %vm303 = vcmask 253952
    %304 = vst.msk [vmem:[#allocation3] sm:$0x1] %vm303, %v302
    %s305 = sld [smem:[#allocation4 + $0x1]]
    %s306 = scalar_lea.vmem [#allocation2], %s305
    %v307 = vld [vmem:[%s306] sm:$0x1]
    %308 = vst.msk [vmem:[#allocation3 + $0x1] sm:$0x1] %vm303, %v307
    %310 = vrot.lane.b32.xlu0 %v299, 32
    %v311 = vpop.permute.xlu0 %310
    %vm313 = vcmask 517376
    %314 = vst.msk [vmem:[#allocation3] sm:$0x3] %vm313, %v311
    %v315 = vld [vmem:[#allocation3] sm:$0x3]
    %v316 = vpack.c.bf16 %v315, %v315
    %v317 = vlaneseq
    %v318 = vshrl.u32 %v317, 7
    %v319 = vsub.s32 0, %v318
    %v320 = vrot.slane %v80, %v319
    %v329 = vunpack.c.l.b16 %v66
    %v330 = vunpack.c.l.b16 %v67
    %v331 = vunpack.c.l.b16 %v68
    %v332 = vunpack.c.l.b16 %v69
    %v333 = vunpack.c.l.b16 %v70
    %v334 = vunpack.c.l.b16 %v71
    %v335 = vunpack.c.l.b16 %v72
    %v336 = vunpack.c.l.b16 %v73
    %v337 = vpack.c.b16 %v330, %v329
    %v338 = vpack.c.b16 %v332, %v331
    %v339 = vpack.c.b16 %v334, %v333
    %v340 = vpack.c.b16 %v336, %v335
    %vm345 = vcmask 523264
    %v347 = vsel %vm345, %v316, 0
    %349 = vmatprep.subr.bf16.mxu0 0
    %350 = vmatpush1.bf16.msra.mxu0 %v337
    %351 = vmatprep.subr.bf16.mxu0 0
    %352 = vmatpush1.bf16.msra.mxu0 %v338
    %353 = vmatprep.subr.bf16.mxu0 0
    %354 = vmatpush1.bf16.msra.mxu0 %v339
    %355 = vmatprep.subr.bf16.mxu0 0
    %356 = vmatpush1.bf16.msra.mxu0 %v340
    %357 = vmatprep.subr.bf16.mxu0 0
    %358 = vmatpush1.bf16.msra.mxu0 0
    %359 = vmatprep.subr.bf16.mxu0 0
    %360 = vmatpush1.bf16.msra.mxu0 0
    %361 = vmatprep.subr.bf16.mxu0 0
    %362 = vmatpush1.bf16.msra.mxu0 0
    %363 = vmatprep.subr.bf16.mxu0 0
    %364 = vmatpush1.bf16.msra.mxu0 0
    %365 = vmatprep.subr.bf16.mxu0 0
    %366 = vmatpush1.bf16.msra.mxu0 0
    %367 = vmatprep.subr.bf16.mxu0 0
    %368 = vmatpush1.bf16.msra.mxu0 0
    %369 = vmatprep.subr.bf16.mxu0 0
    %370 = vmatpush1.bf16.msra.mxu0 0
    %371 = vmatprep.subr.bf16.mxu0 0
    %372 = vmatpush1.bf16.msra.mxu0 0
    %373 = vmatprep.subr.bf16.mxu0 0
    %374 = vmatpush1.bf16.msra.mxu0 0
    %375 = vmatprep.subr.bf16.mxu0 0
    %376 = vmatpush1.bf16.msra.mxu0 0
    %377 = vmatprep.subr.bf16.mxu0 0
    %378 = vmatpush1.bf16.msra.mxu0 0
    %379 = vmatprep.subr.bf16.mxu0 0
    %380 = vmatpush1.bf16.msra.mxu0 0
    %381 = vmatprep.mubr.bf16.mxu0 0
    %382 = vmatmul.mubr.bf16.gmra.mrb[0].mxu0 %v347
    %v383 = vpop.f32.mrb[0].mxu0
    %v384 = vadd.f32 %v320, %v383
    %v385 = vpop.f32.mrb[0].mxu0
    %v386 = vpop.f32.mrb[0].mxu0
    %v387 = vpop.f32.mrb[0].mxu0
    %388 = vdwg.mxu0
    %v389 = vmax.f32 %v384, 0.0
    %v390 = vpack.c.bf16 %v389, %v389
    %v391 = vlaneseq
    %v392 = vshrl.u32 %v391, 7
    %v393 = vsub.s32 0, %v392
    %v394 = vrot.slane %v81, %v393
    %v399 = vunpack.c.l.b16 %v74
    %v400 = vunpack.c.l.b16 %v75
    %v401 = vunpack.c.l.b16 %v76
    %v402 = vunpack.c.l.b16 %v77
    %v403 = vpack.c.b16 %v400, %v399
    %v404 = vpack.c.b16 %v402, %v401
    %v408 = vsel %vm191, %v390, 0
    %410 = vmatprep.subr.bf16.mxu0 0
    %411 = vmatpush1.bf16.msra.mxu0 %v403
    %412 = vmatprep.subr.bf16.mxu0 0
    %413 = vmatpush1.bf16.msra.mxu0 %v404
    %414 = vmatprep.subr.bf16.mxu0 0
    %415 = vmatpush1.bf16.msra.mxu0 0
    %416 = vmatprep.subr.bf16.mxu0 0
    %417 = vmatpush1.bf16.msra.mxu0 0
    %418 = vmatprep.subr.bf16.mxu0 0
    %419 = vmatpush1.bf16.msra.mxu0 0
    %420 = vmatprep.subr.bf16.mxu0 0
    %421 = vmatpush1.bf16.msra.mxu0 0
    %422 = vmatprep.subr.bf16.mxu0 0
    %423 = vmatpush1.bf16.msra.mxu0 0
    %424 = vmatprep.subr.bf16.mxu0 0
    %425 = vmatpush1.bf16.msra.mxu0 0
    %426 = vmatprep.subr.bf16.mxu0 0
    %427 = vmatpush1.bf16.msra.mxu0 0
    %428 = vmatprep.subr.bf16.mxu0 0
    %429 = vmatpush1.bf16.msra.mxu0 0
    %430 = vmatprep.subr.bf16.mxu0 0
    %431 = vmatpush1.bf16.msra.mxu0 0
    %432 = vmatprep.subr.bf16.mxu0 0
    %433 = vmatpush1.bf16.msra.mxu0 0
    %434 = vmatprep.subr.bf16.mxu0 0
    %435 = vmatpush1.bf16.msra.mxu0 0
    %436 = vmatprep.subr.bf16.mxu0 0
    %437 = vmatpush1.bf16.msra.mxu0 0
    %438 = vmatprep.subr.bf16.mxu0 0
    %439 = vmatpush1.bf16.msra.mxu0 0
    %440 = vmatprep.subr.bf16.mxu0 0
    %441 = vmatpush1.bf16.msra.mxu0 0
    %442 = vmatprep.mubr.bf16.mxu0 0
    %443 = vmatmul.mubr.bf16.gmra.mrb[0].mxu0 %v408
    %v444 = vpop.f32.mrb[0].mxu0
    %v445 = vadd.f32 %v394, %v444
    %v446 = vpop.f32.mrb[0].mxu0
    %v447 = vpop.f32.mrb[0].mxu0
    %v448 = vpop.f32.mrb[0].mxu0
    %449 = vdwg.mxu0
    %vm450 = vcmask 9216
    %v451 = vsel %vm450, %v445, -inf
    %452 = vmax.xlane.f32.xlu0 %v451
    %v453 = vpop.xlane.xlu0 %452
    %v454 = vsub.f32 %v445, %v453
    %v455 = vmul.f32 %v454, 1.442695
    %v456 = vpow.pop %v455
    %v457 = vsel %vm450, %v456, 0.0
    %458 = vadd.xlane.f32.xlu0 %v457
    %v459 = vpop.xlane.xlu0 %458
    %v460 = vlog2.pop %v459
    %v461 = vmul.f32 %v460, 0.6931472
    %v462 = vadd.f32 %v461, %v453
    %v463 = vsub.f32 %v445, %v462
    %465 = vrot.lane.b32.xlu0 %v463, 32
    %v466 = vpop.permute.xlu0 %465
    %v468 = vsel %vm191, %v384, %v466
    %vm469 = vcmask 277504
    %v470 = vsel %vm469, %v468, 0.0
    %471 = vst [vmem:[#allocation11] sm:$0x3] %v470
    // Predicated region
    $region30: #{tpu_custom_call.1} parent=1 // pred_check
      _
    $region31: #{tpu_custom_call.1} parent=1 // pred_check_branch
      %473 = sbr.rel (0) target = $region33
    $region32: #{tpu_custom_call.1} parent=1 // pred_region
      %s475 = ssub.s32 32, 32
      %476 = vsyncadd [#allocation6], %s475
      %s478 = sshll.u32 [#allocation11], 4
      %s479 = int_to_ptr.vmem [resolvable:$true] %s478
      %481 = dma.vmem_to_hbm [thread:$0]  %s479, 32, %s4, [#allocation6]
    $region33: #{tpu_custom_call.1} parent=1 // pred_fallthru
      _
    // Predicated region
    $region34: #{tpu_custom_call.1} parent=1 // pred_check
      _
    $region35: #{tpu_custom_call.1} parent=1 // pred_check_branch
      %483 = sbr.rel (0) target = $region37
    $region36: #{tpu_custom_call.1} parent=1 // pred_region
      %484 = dma.done [#allocation6], 32
    $region37: #{tpu_custom_call.1} parent=1 // pred_fallthru
      _
    %485 = vsyncpa [#allocation5], 1
    %486 = vsyncpa [#allocation10], 1
    %487 = vsyncpa [#allocation6], 1
    %488 = vsyncpa [#allocation7], 1

</llo_original>
